<compile_context>
chip_gen: v7x
topology: tpu7x:2x2x1
jax: 0.10.0
libtpu: 0.0.40
codegen_flags: <defaults>
</compile_context>

<pallas_src>
import functools

import jax
import jax.numpy as jnp
from jax.experimental import pallas as pl
from jax.experimental.pallas import tpu as pltpu


def _softplus(x):
    # numerically-stable softplus (VPU max/abs + EUP exp/log1p)
    return jnp.maximum(x, 0.0) + jnp.log1p(jnp.exp(-jnp.abs(x)))


def _round_up(x, m):
    return ((x + m - 1) // m) * m


def _a_net_beta_kernel(s_ref, w1_ref, b1_ref, w2_ref, b2_ref,
                       wh_ref, bh_ref, out_ref, *, action_n):
    # hidden MLP: Linear -> Tanh -> Linear -> Tanh
    # (weights are bf16; activations cast to bf16 only at the MXU boundary,
    #  accumulation and all elementwise math stay f32 -> safe on v5e too)
    s = s_ref[...]
    h1 = jnp.tanh(
        jnp.dot(s.astype(w1_ref.dtype), w1_ref[...],
                preferred_element_type=jnp.float32) + b1_ref[...])
    h2 = jnp.tanh(
        jnp.dot(h1.astype(w2_ref.dtype), w2_ref[...],
                preferred_element_type=jnp.float32) + b2_ref[...])

    # fused alpha/beta heads: one dot, one softplus + 1
    head = (jnp.dot(h2.astype(wh_ref.dtype), wh_ref[...],
                    preferred_element_type=jnp.float32) + bh_ref[...])
    ab = _softplus(head) + 1.0
    alpha = ab[:, :action_n]
    beta = ab[:, action_n:]

    # deterministic action = mean of Beta(alpha, beta); EUP vrcp
    action = alpha * pl.reciprocal(alpha + beta, approx=True)

    # single packed output slab: [alpha | beta | action]
    out_ref[...] = jnp.concatenate([alpha, beta, action], axis=1)


@functools.partial(jax.jit, static_argnames=("isdeter", "block_b"))
def a_net_beta_forward(s, params, isdeter=True, key=None, block_b=1024):
    """Forward pass of A_net_beta.

    Returns (action, log_probs, (alpha, beta)) mirroring the PyTorch module
    (the Beta `distri` object is represented by its (alpha, beta) parameters).

    NOTE: for tiny single-env batches (B ~ 8) the pallas_call is pure
    dispatch/DMA overhead; the kernel pays off for large rollout batches.
    """
    w1, b1, w2, b2, wa, ba, wb, bb = params
    B, input_dim = s.shape
    action_n = wa.shape[1]
    width = w1.shape[1]

    # ---- wrapper-side param prep -------------------------------------------
    # bf16 weights (f32 accumulation in-kernel), f32 biases.
    w1b = w1.astype(jnp.bfloat16)
    w2b = w2.astype(jnp.bfloat16)
    # fused head weight/bias: [width, 2*action_n], [1, 2*action_n]
    wh = jnp.concatenate([wa, wb], axis=1).astype(jnp.bfloat16)
    bh = jnp.concatenate([ba, bb], axis=1).astype(jnp.float32)

    # ---- batch tiling --------------------------------------------------------
    TB = min(block_b, _round_up(B, 8))       # multiple of 8 (sublane), <= block_b
    B_pad = _round_up(B, TB)
    s_f32 = s.astype(jnp.float32)
    if B_pad != B:
        s_f32 = jnp.pad(s_f32, ((0, B_pad - B), (0, 0)))
    grid = (B_pad // TB,)

    def _tiled(shape):      # blocks that move with the batch grid index
        return pl.BlockSpec(shape, lambda i: (i, 0))

    def _resident(shape):   # weights/biases: constant block index -> no re-DMA
        return pl.BlockSpec(shape, lambda i: (0, 0))

    out_packed = pl.pallas_call(
        functools.partial(_a_net_beta_kernel, action_n=action_n),
        out_shape=jax.ShapeDtypeStruct((B_pad, 3 * action_n), jnp.float32),
        grid=grid,
        in_specs=[
            _tiled((TB, input_dim)),                 # s tile
            _resident((input_dim, width)),           # w1
            _resident((1, width)),                   # b1
            _resident((width, width)),               # w2
            _resident((1, width)),                   # b2
            _resident((width, 2 * action_n)),        # fused head weight
            _resident((1, 2 * action_n)),            # fused head bias
        ],
        out_specs=_tiled((TB, 3 * action_n)),
        compiler_params=pltpu.CompilerParams(
            dimension_semantics=("parallel",)),
    )(s_f32, w1b, b1, w2b, b2, wh, bh)

    out_packed = out_packed[:B]
    alpha = out_packed[:, :action_n]
    beta = out_packed[:, action_n:2 * action_n]
    det_action = out_packed[:, 2 * action_n:]

    if isdeter:
        return det_action, None, (alpha, beta)

    # Stochastic branch (plain-JAX glue on kernel outputs).
    # TODO(synk): Beta sampling / log_prob have no in-kernel Pallas equivalent.
    sample = jax.random.beta(key, alpha, beta)
    eps = 1e-6
    sample_c = jnp.clip(sample, eps, 1.0 - eps)   # avoid -inf in log-probs
    log_probs = ((alpha - 1.0) * jnp.log(sample_c)
                 + (beta - 1.0) * jnp.log1p(-sample_c)
                 - (jax.scipy.special.gammaln(alpha)
                    + jax.scipy.special.gammaln(beta)
                    - jax.scipy.special.gammaln(alpha + beta)))
    return sample, log_probs, (alpha, beta)


def a_net_beta_reference(s, params):
    """Pure-JAX f32 reference of the PyTorch forward (isdeter=True path)."""
    w1, b1, w2, b2, wa, ba, wb, bb = params
    h1 = jnp.tanh(s @ w1 + b1)
    h2 = jnp.tanh(h1 @ w2 + b2)
    alpha = jax.nn.softplus(h2 @ wa + ba) + 1.0
    beta = jax.nn.softplus(h2 @ wb + bb) + 1.0
    return alpha / (alpha + beta), alpha, beta


def init_params(key, input_dim, action_n, width):
    """Deterministic synthetic parameters (PyTorch Linear shapes, transposed
    to [in, out]; biases kept as [1, out])."""
    ks = jax.random.split(key, 8)
    scale = 0.1
    w1 = scale * jax.random.normal(ks[0], (input_dim, width), jnp.float32)
    b1 = scale * jax.random.normal(ks[1], (1, width), jnp.float32)
    w2 = scale * jax.random.normal(ks[2], (width, width), jnp.float32)
    b2 = scale * jax.random.normal(ks[3], (1, width), jnp.float32)
    wa = scale * jax.random.normal(ks[4], (width, action_n), jnp.float32)
    ba = scale * jax.random.normal(ks[5], (1, action_n), jnp.float32)
    wb = scale * jax.random.normal(ks[6], (width, action_n), jnp.float32)
    bb = scale * jax.random.normal(ks[7], (1, action_n), jnp.float32)
    return (w1, b1, w2, b2, wa, ba, wb, bb)


if __name__ == "__main__":
    key = jax.random.PRNGKey(0)
    k_in, k_param, k_in2, k_samp = jax.random.split(key, 4)

    input_dim = 16
    width = 32
    action_n = 4
    params = init_params(k_param, input_dim, action_n, width)

    # --- small batch (single grid step) --------------------------------------
    batch = 8
    s = jax.random.normal(k_in, (batch, input_dim), jnp.float32)
    action, log_probs, (alpha, beta) = a_net_beta_forward(s, params, isdeter=True)
    jax.block_until_ready((action, alpha, beta))

    assert bool(jnp.all(alpha > 1.0)) and bool(jnp.all(beta > 1.0))
    assert bool(jnp.all((action > 0.0) & (action < 1.0)))

    a_ref, al_ref, be_ref = a_net_beta_reference(s, params)
    assert bool(jnp.allclose(alpha, al_ref, atol=5e-2, rtol=5e-2))
    assert bool(jnp.allclose(beta, be_ref, atol=5e-2, rtol=5e-2))
    assert bool(jnp.allclose(action, a_ref, atol=5e-2, rtol=5e-2))

    # --- larger, non-multiple batch with a small block size ------------------
    # (exercises the multi-step grid + padding path explicitly)
    batch2 = 520
    s2 = jax.random.normal(k_in2, (batch2, input_dim), jnp.float32)
    action2, _, (alpha2, beta2) = a_net_beta_forward(
        s2, params, isdeter=True, block_b=256)
    jax.block_until_ready((action2, alpha2, beta2))
    a2_ref, al2_ref, be2_ref = a_net_beta_reference(s2, params)
    assert action2.shape == (batch2, action_n)
    assert bool(jnp.allclose(alpha2, al2_ref, atol=5e-2, rtol=5e-2))
    assert bool(jnp.allclose(beta2, be2_ref, atol=5e-2, rtol=5e-2))
    assert bool(jnp.allclose(action2, a2_ref, atol=5e-2, rtol=5e-2))

    # --- stochastic branch (plain-JAX glue on kernel outputs) ----------------
    samp, lp, (al3, be3) = a_net_beta_forward(
        s, params, isdeter=False, key=k_samp)
    jax.block_until_ready((samp, lp))
    assert samp.shape == (batch, action_n) and lp.shape == (batch, action_n)
    assert bool(jnp.all(jnp.isfinite(lp)))

    print("KERNEL_OK")
</pallas_src>

<mosaic_0001>
module attributes {stable_mosaic.version = 11 : i64} {
  func.func @_a_net_beta_kernel(%arg0: i32, %arg1: memref<8x16xf32, #tpu.memory_space<vmem>>, %arg2: memref<16x32xbf16, #tpu.memory_space<vmem>>, %arg3: memref<1x32xf32, #tpu.memory_space<vmem>>, %arg4: memref<32x32xbf16, #tpu.memory_space<vmem>>, %arg5: memref<1x32xf32, #tpu.memory_space<vmem>>, %arg6: memref<32x8xbf16, #tpu.memory_space<vmem>>, %arg7: memref<1x8xf32, #tpu.memory_space<vmem>>, %arg8: memref<8x12xf32, #tpu.memory_space<vmem>>) attributes {dimension_semantics = [#tpu.dimension_semantics<parallel>], iteration_bounds = array<i64: 1>, scalar_prefetch = 0 : i64, scratch_operands = 0 : i64, tpu.core_type = #tpu.core_type<tc>, window_params = [{transform_indices = @transform_0, window_bounds = array<i64: 8, 16>}, {pipeline_mode = #tpu.pipeline_mode<synchronous>, transform_indices = @transform_1, window_bounds = array<i64: 16, 32>}, {pipeline_mode = #tpu.pipeline_mode<synchronous>, transform_indices = @transform_2, window_bounds = array<i64: 1, 32>}, {pipeline_mode = #tpu.pipeline_mode<synchronous>, transform_indices = @transform_3, window_bounds = array<i64: 32, 32>}, {pipeline_mode = #tpu.pipeline_mode<synchronous>, transform_indices = @transform_4, window_bounds = array<i64: 1, 32>}, {pipeline_mode = #tpu.pipeline_mode<synchronous>, transform_indices = @transform_5, window_bounds = array<i64: 32, 8>}, {pipeline_mode = #tpu.pipeline_mode<synchronous>, transform_indices = @transform_6, window_bounds = array<i64: 1, 8>}, {transform_indices = @transform_7, window_bounds = array<i64: 8, 12>}]} {
    %c0 = arith.constant 0 : index
    %c0_0 = arith.constant 0 : index
    %0 = vector.load %arg1[%c0, %c0_0] : memref<8x16xf32, #tpu.memory_space<vmem>>, vector<8x16xf32>
    %1 = arith.truncf %0 : vector<8x16xf32> to vector<8x16xbf16>
    %c0_1 = arith.constant 0 : index
    %c0_2 = arith.constant 0 : index
    %2 = vector.load %arg2[%c0_1, %c0_2] : memref<16x32xbf16, #tpu.memory_space<vmem>>, vector<16x32xbf16>
    %cst = arith.constant dense<0.000000e+00> : vector<8x32xf32>
    %3 = tpu.matmul %1, %2, %cst {dimension_numbers = #tpu.dot_dimension_numbers<[1], [0], [0], [1], [0, 0, 1, 1], [], []>} : vector<8x16xbf16>, vector<16x32xbf16>, vector<8x32xf32> -> vector<8x32xf32>
    %c0_3 = arith.constant 0 : index
    %c0_4 = arith.constant 0 : index
    %4 = vector.load %arg3[%c0_3, %c0_4] : memref<1x32xf32, #tpu.memory_space<vmem>>, vector<1x32xf32>
    %5 = vector.broadcast %4 : vector<1x32xf32> to vector<8x32xf32>
    %6 = arith.addf %3, %5 : vector<8x32xf32>
    %7 = math.tanh %6 : vector<8x32xf32>
    %8 = arith.truncf %7 : vector<8x32xf32> to vector<8x32xbf16>
    %c0_5 = arith.constant 0 : index
    %c0_6 = arith.constant 0 : index
    %9 = vector.load %arg4[%c0_5, %c0_6] : memref<32x32xbf16, #tpu.memory_space<vmem>>, vector<32x32xbf16>
    %cst_7 = arith.constant dense<0.000000e+00> : vector<8x32xf32>
    %10 = tpu.matmul %8, %9, %cst_7 {dimension_numbers = #tpu.dot_dimension_numbers<[1], [0], [0], [1], [0, 0, 1, 1], [], []>} : vector<8x32xbf16>, vector<32x32xbf16>, vector<8x32xf32> -> vector<8x32xf32>
    %c0_8 = arith.constant 0 : index
    %c0_9 = arith.constant 0 : index
    %11 = vector.load %arg5[%c0_8, %c0_9] : memref<1x32xf32, #tpu.memory_space<vmem>>, vector<1x32xf32>
    %12 = vector.broadcast %11 : vector<1x32xf32> to vector<8x32xf32>
    %13 = arith.addf %10, %12 : vector<8x32xf32>
    %14 = math.tanh %13 : vector<8x32xf32>
    %15 = arith.truncf %14 : vector<8x32xf32> to vector<8x32xbf16>
    %c0_10 = arith.constant 0 : index
    %c0_11 = arith.constant 0 : index
    %16 = vector.load %arg6[%c0_10, %c0_11] : memref<32x8xbf16, #tpu.memory_space<vmem>>, vector<32x8xbf16>
    %cst_12 = arith.constant dense<0.000000e+00> : vector<8x8xf32>
    %17 = tpu.matmul %15, %16, %cst_12 {dimension_numbers = #tpu.dot_dimension_numbers<[1], [0], [0], [1], [0, 0, 1, 1], [], []>} : vector<8x32xbf16>, vector<32x8xbf16>, vector<8x8xf32> -> vector<8x8xf32>
    %c0_13 = arith.constant 0 : index
    %c0_14 = arith.constant 0 : index
    %18 = vector.load %arg7[%c0_13, %c0_14] : memref<1x8xf32, #tpu.memory_space<vmem>>, vector<1x8xf32>
    %19 = vector.broadcast %18 : vector<1x8xf32> to vector<8x8xf32>
    %20 = arith.addf %17, %19 : vector<8x8xf32>
    %cst_15 = arith.constant 0.000000e+00 : f32
    %21 = vector.broadcast %cst_15 : f32 to vector<8x8xf32>
    %22 = arith.maximumf %20, %21 : vector<8x8xf32>
    %23 = math.absf %20 : vector<8x8xf32>
    %cst_16 = arith.constant 0.000000e+00 : f32
    %24 = vector.broadcast %cst_16 : f32 to vector<8x8xf32>
    %25 = arith.subf %24, %23 : vector<8x8xf32>
    %26 = math.exp %25 : vector<8x8xf32>
    %27 = math.log1p %26 : vector<8x8xf32>
    %28 = arith.addf %22, %27 : vector<8x8xf32>
    %cst_17 = arith.constant 1.000000e+00 : f32
    %29 = vector.broadcast %cst_17 : f32 to vector<8x8xf32>
    %30 = arith.addf %28, %29 : vector<8x8xf32>
    %31 = vector.extract_strided_slice %30 {offsets = [0, 0], sizes = [8, 4], strides = [1, 1]} : vector<8x8xf32> to vector<8x4xf32>
    %32 = vector.extract_strided_slice %30 {offsets = [0, 4], sizes = [8, 4], strides = [1, 1]} : vector<8x8xf32> to vector<8x4xf32>
    %33 = arith.addf %31, %32 : vector<8x4xf32>
    %34 = tpu.reciprocal %33 {approx = true} : vector<8x4xf32> -> vector<8x4xf32>
    %35 = arith.mulf %31, %34 : vector<8x4xf32>
    %36 = tpu.concatenate %31, %32, %35 in 1 : vector<8x4xf32>, vector<8x4xf32>, vector<8x4xf32> -> vector<8x12xf32>
    %c0_18 = arith.constant 0 : index
    %c0_19 = arith.constant 0 : index
    %37 = vector.load %arg8[%c0_18, %c0_19] : memref<8x12xf32, #tpu.memory_space<vmem>>, vector<8x12xf32>
    tpu.vector_store %arg8[%c0_18, %c0_19], %36 {strides = array<i32>} : memref<8x12xf32, #tpu.memory_space<vmem>>, vector<8x12xf32>,
    return
  }
  func.func @transform_0(%arg0: i32) -> (i32, i32) {
    %c0_i32 = arith.constant 0 : i32
    %c0_i32_0 = arith.constant 0 : i32
    return %arg0, %c0_i32 : i32, i32
  }
  func.func @transform_1(%arg0: i32) -> (i32, i32) {
    %c0_i32 = arith.constant 0 : i32
    %c0_i32_0 = arith.constant 0 : i32
    %c0_i32_1 = arith.constant 0 : i32
    return %c0_i32, %c0_i32_0 : i32, i32
  }
  func.func @transform_2(%arg0: i32) -> (i32, i32) {
    %c0_i32 = arith.constant 0 : i32
    %c0_i32_0 = arith.constant 0 : i32
    %c0_i32_1 = arith.constant 0 : i32
    return %c0_i32, %c0_i32_0 : i32, i32
  }
  func.func @transform_3(%arg0: i32) -> (i32, i32) {
    %c0_i32 = arith.constant 0 : i32
    %c0_i32_0 = arith.constant 0 : i32
    %c0_i32_1 = arith.constant 0 : i32
    return %c0_i32, %c0_i32_0 : i32, i32
  }
  func.func @transform_4(%arg0: i32) -> (i32, i32) {
    %c0_i32 = arith.constant 0 : i32
    %c0_i32_0 = arith.constant 0 : i32
    %c0_i32_1 = arith.constant 0 : i32
    return %c0_i32, %c0_i32_0 : i32, i32
  }
  func.func @transform_5(%arg0: i32) -> (i32, i32) {
    %c0_i32 = arith.constant 0 : i32
    %c0_i32_0 = arith.constant 0 : i32
    %c0_i32_1 = arith.constant 0 : i32
    return %c0_i32, %c0_i32_0 : i32, i32
  }
  func.func @transform_6(%arg0: i32) -> (i32, i32) {
    %c0_i32 = arith.constant 0 : i32
    %c0_i32_0 = arith.constant 0 : i32
    %c0_i32_1 = arith.constant 0 : i32
    return %c0_i32, %c0_i32_0 : i32, i32
  }
  func.func @transform_7(%arg0: i32) -> (i32, i32) {
    %c0_i32 = arith.constant 0 : i32
    %c0_i32_0 = arith.constant 0 : i32
    return %arg0, %c0_i32 : i32, i32
  }
}

</mosaic_0001>

<llo_original>
// kernel: a_net_beta_forward.1
$region0: #{a_net_beta_forward.1}
  #allocation0 [shape = 'u32[]', space=smem, size = 0x4, offset = 0x4, fixed_abs, tag = 'smem constant byte address 0x4 - core index']
  #allocation1 [shape = 'u32[144,128]{1,0:T(1,128)}', space=vmem, size = 0x12000, scoped, tag = 'internal scratch']
  %s0 = inlined_call_operand.vmem [shape: f32[8,16], index: 0, kind: input, shape index: {}]
  %s1 = inlined_call_operand.vmem [shape: bf16[16,32], index: 1, kind: input, shape index: {}]
  %s2 = inlined_call_operand.vmem [shape: f32[1,32], index: 2, kind: input, shape index: {}]
  %s3 = inlined_call_operand.vmem [shape: bf16[32,32], index: 3, kind: input, shape index: {}]
  %s4 = inlined_call_operand.vmem [shape: f32[1,32], index: 4, kind: input, shape index: {}]
  %s5 = inlined_call_operand.vmem [shape: bf16[32,8], index: 5, kind: input, shape index: {}]
  %s6 = inlined_call_operand.vmem [shape: f32[1,8], index: 6, kind: input, shape index: {}]
  %s7 = inlined_call_operand.vmem [shape: f32[8,12], index: 7, kind: output, shape index: {}]
  %s8 = sld [smem:[#allocation0]]
  $region38: #{a_net_beta_forward.1} parent=0
    _
  %s10 = ssub.s32 1, %s8
  %s11 = scalar_select 0, %s10, %s8
  // Predicated region
  $region2: #{a_net_beta_forward.1} parent=0 // pred_check
    _
  $region3: #{a_net_beta_forward.1} parent=0 // pred_check_branch
    %13 = sbr.rel (0) target = $region5
  $region4: #{a_net_beta_forward.1} parent=0 // pred_region
    _
  $region5: #{a_net_beta_forward.1} parent=0 // pred_fallthru
    _
  // Predicated region
  $region6: #{a_net_beta_forward.1} parent=0 // pred_check
    _
  $region7: #{a_net_beta_forward.1} parent=0 // pred_check_branch
    %15 = sbr.rel (0) target = $region9
  $region8: #{a_net_beta_forward.1} parent=0 // pred_region
    _
  $region9: #{a_net_beta_forward.1} parent=0 // pred_fallthru
    _
  // Predicated region
  $region10: #{a_net_beta_forward.1} parent=0 // pred_check
    _
  $region11: #{a_net_beta_forward.1} parent=0 // pred_check_branch
    %17 = sbr.rel (0) target = $region13
  $region12: #{a_net_beta_forward.1} parent=0 // pred_region
    _
  $region13: #{a_net_beta_forward.1} parent=0 // pred_fallthru
    _
  // Predicated region
  $region14: #{a_net_beta_forward.1} parent=0 // pred_check
    _
  $region15: #{a_net_beta_forward.1} parent=0 // pred_check_branch
    %19 = sbr.rel (0) target = $region17
  $region16: #{a_net_beta_forward.1} parent=0 // pred_region
    _
  $region17: #{a_net_beta_forward.1} parent=0 // pred_fallthru
    _
  // Predicated region
  $region18: #{a_net_beta_forward.1} parent=0 // pred_check
    _
  $region19: #{a_net_beta_forward.1} parent=0 // pred_check_branch
    %21 = sbr.rel (0) target = $region21
  $region20: #{a_net_beta_forward.1} parent=0 // pred_region
    _
  $region21: #{a_net_beta_forward.1} parent=0 // pred_fallthru
    _
  // Predicated region
  $region22: #{a_net_beta_forward.1} parent=0 // pred_check
    _
  $region23: #{a_net_beta_forward.1} parent=0 // pred_check_branch
    %23 = sbr.rel (0) target = $region25
  $region24: #{a_net_beta_forward.1} parent=0 // pred_region
    _
  $region25: #{a_net_beta_forward.1} parent=0 // pred_fallthru
    _
  // Predicated region
  $region26: #{a_net_beta_forward.1} parent=0 // pred_check
    _
  $region27: #{a_net_beta_forward.1} parent=0 // pred_check_branch
    %25 = sbr.rel (0) target = $region29
  $region28: #{a_net_beta_forward.1} parent=0 // pred_region
    _
  $region29: #{a_net_beta_forward.1} parent=0 // pred_fallthru
    _
  %v27 = vld [vmem:[%s0] sm:$0xff]
  %v28 = vpack.c.bf16 %v27, %v27
  %v29 = vld [vmem:[%s1] sm:$0xf]
  %v30 = vld [vmem:[%s1 + $0x4] sm:$0xf]
  %v31 = vld [vmem:[%s2] sm:$0x1]
  %v33 = vlaneseq
  %v34 = vshrl.u32 %v33, 7
  %v35 = vsub.s32 0, %v34
  %v36 = vrot.slane %v31, %v35
  %v40 = vunpack.c.l.b16 %v29
  %v41 = vunpack.c.l.b16 %v30
  %v42 = vpack.c.b16 %v41, %v40
  %vm44 = vcmask 130048
  %v46 = vsel %vm44, %v28, 0
  %48 = vmatprep.subr.bf16.mxu0 0
  %49 = vmatpush1.bf16.msra.mxu0 %v42
  %50 = vmatprep.subr.bf16.mxu0 0
  %51 = vmatpush1.bf16.msra.mxu0 0
  %52 = vmatprep.subr.bf16.mxu0 0
  %53 = vmatpush1.bf16.msra.mxu0 0
  %54 = vmatprep.subr.bf16.mxu0 0
  %55 = vmatpush1.bf16.msra.mxu0 0
  %56 = vmatprep.subr.bf16.mxu0 0
  %57 = vmatpush1.bf16.msra.mxu0 0
  %58 = vmatprep.subr.bf16.mxu0 0
  %59 = vmatpush1.bf16.msra.mxu0 0
  %60 = vmatprep.subr.bf16.mxu0 0
  %61 = vmatpush1.bf16.msra.mxu0 0
  %62 = vmatprep.subr.bf16.mxu0 0
  %63 = vmatpush1.bf16.msra.mxu0 0
  %64 = vmatprep.subr.bf16.mxu0 0
  %65 = vmatpush1.bf16.msra.mxu0 0
  %66 = vmatprep.subr.bf16.mxu0 0
  %67 = vmatpush1.bf16.msra.mxu0 0
  %68 = vmatprep.subr.bf16.mxu0 0
  %69 = vmatpush1.bf16.msra.mxu0 0
  %70 = vmatprep.subr.bf16.mxu0 0
  %71 = vmatpush1.bf16.msra.mxu0 0
  %72 = vmatprep.subr.bf16.mxu0 0
  %73 = vmatpush1.bf16.msra.mxu0 0
  %74 = vmatprep.subr.bf16.mxu0 0
  %75 = vmatpush1.bf16.msra.mxu0 0
  %76 = vmatprep.subr.bf16.mxu0 0
  %77 = vmatpush1.bf16.msra.mxu0 0
  %78 = vmatprep.subr.bf16.mxu0 0
  %79 = vmatpush1.bf16.msra.mxu0 0
  %80 = vmatprep.mubr.bf16.mxu0 0
  %81 = vmatmul.mubr.bf16.gmra.mrb[0].mxu0 %v46
  %v82 = vpop.f32.mrb[0].mxu0
  %v83 = vadd.f32 %v36, %v82
  %v84 = vpop.f32.mrb[0].mxu0
  %v85 = vpop.f32.mrb[0].mxu0
  %v86 = vpop.f32.mrb[0].mxu0
  %87 = vdwg.mxu0
  %v88 = vtanh.pop %v83
  %v89 = vpack.c.bf16 %v88, %v88
  %v90 = vld [vmem:[%s3] sm:$0xf]
  %v91 = vld [vmem:[%s3 + $0x4] sm:$0xf]
  %v92 = vld [vmem:[%s3 + $0x8] sm:$0xf]
  %v93 = vld [vmem:[%s3 + $0xc] sm:$0xf]
  %v94 = vld [vmem:[%s4] sm:$0x1]
  %v96 = vlaneseq
  %v97 = vshrl.u32 %v96, 7
  %v98 = vsub.s32 0, %v97
  %v99 = vrot.slane %v94, %v98
  %v105 = vunpack.c.l.b16 %v90
  %v106 = vunpack.c.l.b16 %v91
  %v107 = vunpack.c.l.b16 %v92
  %v108 = vunpack.c.l.b16 %v93
  %v109 = vpack.c.b16 %v106, %v105
  %v110 = vpack.c.b16 %v108, %v107
  %vm113 = vcmask 261120
  %v115 = vsel %vm113, %v89, 0
  %117 = vmatprep.subr.bf16.mxu0 0
  %118 = vmatpush1.bf16.msra.mxu0 %v109
  %119 = vmatprep.subr.bf16.mxu0 0
  %120 = vmatpush1.bf16.msra.mxu0 %v110
  %121 = vmatprep.subr.bf16.mxu0 0
  %122 = vmatpush1.bf16.msra.mxu0 0
  %123 = vmatprep.subr.bf16.mxu0 0
  %124 = vmatpush1.bf16.msra.mxu0 0
  %125 = vmatprep.subr.bf16.mxu0 0
  %126 = vmatpush1.bf16.msra.mxu0 0
  %127 = vmatprep.subr.bf16.mxu0 0
  %128 = vmatpush1.bf16.msra.mxu0 0
  %129 = vmatprep.subr.bf16.mxu0 0
  %130 = vmatpush1.bf16.msra.mxu0 0
  %131 = vmatprep.subr.bf16.mxu0 0
  %132 = vmatpush1.bf16.msra.mxu0 0
  %133 = vmatprep.subr.bf16.mxu0 0
  %134 = vmatpush1.bf16.msra.mxu0 0
  %135 = vmatprep.subr.bf16.mxu0 0
  %136 = vmatpush1.bf16.msra.mxu0 0
  %137 = vmatprep.subr.bf16.mxu0 0
  %138 = vmatpush1.bf16.msra.mxu0 0
  %139 = vmatprep.subr.bf16.mxu0 0
  %140 = vmatpush1.bf16.msra.mxu0 0
  %141 = vmatprep.subr.bf16.mxu0 0
  %142 = vmatpush1.bf16.msra.mxu0 0
  %143 = vmatprep.subr.bf16.mxu0 0
  %144 = vmatpush1.bf16.msra.mxu0 0
  %145 = vmatprep.subr.bf16.mxu0 0
  %146 = vmatpush1.bf16.msra.mxu0 0
  %147 = vmatprep.subr.bf16.mxu0 0
  %148 = vmatpush1.bf16.msra.mxu0 0
  %149 = vmatprep.mubr.bf16.mxu0 0
  %150 = vmatmul.mubr.bf16.gmra.mrb[0].mxu0 %v115
  %v151 = vpop.f32.mrb[0].mxu0
  %v152 = vadd.f32 %v99, %v151
  %v153 = vpop.f32.mrb[0].mxu0
  %v154 = vpop.f32.mrb[0].mxu0
  %v155 = vpop.f32.mrb[0].mxu0
  %156 = vdwg.mxu0
  %v157 = vtanh.pop %v152
  %v158 = vpack.c.bf16 %v157, %v157
  %v159 = vld [vmem:[%s5] sm:$0xf]
  %v160 = vld [vmem:[%s5 + $0x4] sm:$0xf]
  %v161 = vld [vmem:[%s5 + $0x8] sm:$0xf]
  %v162 = vld [vmem:[%s5 + $0xc] sm:$0xf]
  %v163 = vld [vmem:[%s6] sm:$0x1]
  %v165 = vlaneseq
  %v166 = vshrl.u32 %v165, 7
  %v167 = vsub.s32 0, %v166
  %v168 = vrot.slane %v163, %v167
  %v174 = vunpack.c.l.b16 %v159
  %v175 = vunpack.c.l.b16 %v160
  %v176 = vunpack.c.l.b16 %v161
  %v177 = vunpack.c.l.b16 %v162
  %v178 = vpack.c.b16 %v175, %v174
  %v179 = vpack.c.b16 %v177, %v176
  %v183 = vsel %vm113, %v158, 0
  %185 = vmatprep.subr.bf16.mxu0 0
  %186 = vmatpush1.bf16.msra.mxu0 %v178
  %187 = vmatprep.subr.bf16.mxu0 0
  %188 = vmatpush1.bf16.msra.mxu0 %v179
  %189 = vmatprep.subr.bf16.mxu0 0
  %190 = vmatpush1.bf16.msra.mxu0 0
  %191 = vmatprep.subr.bf16.mxu0 0
  %192 = vmatpush1.bf16.msra.mxu0 0
  %193 = vmatprep.subr.bf16.mxu0 0
  %194 = vmatpush1.bf16.msra.mxu0 0
  %195 = vmatprep.subr.bf16.mxu0 0
  %196 = vmatpush1.bf16.msra.mxu0 0
  %197 = vmatprep.subr.bf16.mxu0 0
  %198 = vmatpush1.bf16.msra.mxu0 0
  %199 = vmatprep.subr.bf16.mxu0 0
  %200 = vmatpush1.bf16.msra.mxu0 0
  %201 = vmatprep.subr.bf16.mxu0 0
  %202 = vmatpush1.bf16.msra.mxu0 0
  %203 = vmatprep.subr.bf16.mxu0 0
  %204 = vmatpush1.bf16.msra.mxu0 0
  %205 = vmatprep.subr.bf16.mxu0 0
  %206 = vmatpush1.bf16.msra.mxu0 0
  %207 = vmatprep.subr.bf16.mxu0 0
  %208 = vmatpush1.bf16.msra.mxu0 0
  %209 = vmatprep.subr.bf16.mxu0 0
  %210 = vmatpush1.bf16.msra.mxu0 0
  %211 = vmatprep.subr.bf16.mxu0 0
  %212 = vmatpush1.bf16.msra.mxu0 0
  %213 = vmatprep.subr.bf16.mxu0 0
  %214 = vmatpush1.bf16.msra.mxu0 0
  %215 = vmatprep.subr.bf16.mxu0 0
  %216 = vmatpush1.bf16.msra.mxu0 0
  %217 = vmatprep.mubr.bf16.mxu0 0
  %218 = vmatmul.mubr.bf16.gmra.mrb[0].mxu0 %v183
  %v219 = vpop.f32.mrb[0].mxu0
  %v220 = vadd.f32 %v168, %v219
  %v221 = vpop.f32.mrb[0].mxu0
  %v222 = vpop.f32.mrb[0].mxu0
  %v223 = vpop.f32.mrb[0].mxu0
  %224 = vdwg.mxu0
  %v225 = vmax.f32 %v220, 0.0
  %v226 = vand.u32 2147483647, %v220
  %v227 = vsub.f32 0.0, %v226
  %v228 = vmul.f32 %v227, 1.442695
  %v229 = vpow.pop %v228
  %v230 = vadd.f32 %v229, 1.0
  %v231 = vlog2.pop %v230
  %v232 = vmul.f32 %v231, 0.6931472
  %v233 = vmul.f32 -0.5, %v229
  %v234 = vadd.f32 %v233, 1.0
  %v235 = vmul.f32 %v234, %v229
  %v236 = vand.u32 2147483647, %v229
  %vm237 = vcmp.lt.f32.partialorder %v236, 0.0004427343
  %v238 = vsel %vm237, %v235, %v232
  %v239 = vadd.f32 %v225, %v238
  %v240 = vadd.f32 %v239, 1.0
  %242 = vrot.lane.b32.xlu0 %v240, 124
  %v243 = vpop.permute.xlu0 %242
  %v245 = vadd.f32 %v240, %v243
  %v246 = vrcp.pop %v245
  %v247 = vmul.f32 %v240, %v246
  %249 = vrot.lane.b32.xlu0 %v247, 8
  %v250 = vpop.permute.xlu0 %249
  %vm252 = vcmask 64512
  %v253 = vsel %vm252, %v240, %v250
  %vm254 = vcmask 97280
  %255 = vst.msk [vmem:[%s7] sm:$0xff] %vm254, %v253
  // Predicated region
  $region30: #{a_net_beta_forward.1} parent=0 // pred_check
    _
  $region31: #{a_net_beta_forward.1} parent=0 // pred_check_branch
    %257 = sbr.rel (0) target = $region33
  $region32: #{a_net_beta_forward.1} parent=0 // pred_region
    _
  $region33: #{a_net_beta_forward.1} parent=0 // pred_fallthru
    _
  // Predicated region
  $region34: #{a_net_beta_forward.1} parent=0 // pred_check
    _
  $region35: #{a_net_beta_forward.1} parent=0 // pred_check_branch
    %259 = sbr.rel (0) target = $region37
  $region36: #{a_net_beta_forward.1} parent=0 // pred_region
    _
  $region37: #{a_net_beta_forward.1} parent=0 // pred_fallthru
    _

</llo_original>
